<compile_context>
chip_gen: v7x
topology: tpu7x:2x2x1
jax: 0.10.0
libtpu: 0.0.40
codegen_flags: <defaults>
</compile_context>

<pallas_src>
import functools

import jax
import jax.numpy as jnp
from jax.experimental import pallas as pl
from jax.experimental.pallas import tpu as pltpu


def _round_up(x, m):
    return ((x + m - 1) // m) * m


def dcll_kernel(x_ref, w1t_ref, b1_ref, w2t_ref, b2_ref, out_ref, pout_ref):
    # x tile: bf16 [TB, in_ch]; weights bf16, biases f32 (padded lanes are 0).
    x = x_ref[...]
    # i2h: Linear (bf16 MXU, f32 accumulate) + bias + Sigmoid in f32.
    h32 = jnp.dot(x, w1t_ref[...], preferred_element_type=jnp.float32)
    h32 = jax.nn.sigmoid(h32 + b1_ref[...])
    out_ref[...] = h32.astype(out_ref.dtype)
    # i2o: Linear (frozen in PyTorch; forward math identical). Padded rows of
    # w2t are zero, so the sigmoid(0)=0.5 values in padded h lanes never leak.
    p32 = jnp.dot(h32.astype(jnp.bfloat16), w2t_ref[...],
                  preferred_element_type=jnp.float32) + b2_ref[...]
    pout_ref[...] = p32.astype(pout_ref.dtype)


def prepare_params(w1, b1, w2, b2):
    """One-time prep: transpose, pad features to 128 lanes, cast weights bf16.

    w1: [out_channels, in_channels], b1: [out_channels]
    w2: [target_size, out_channels], b2: [target_size]
    """
    out_ch, in_ch = w1.shape
    tgt, _ = w2.shape
    out_p = _round_up(out_ch, 128)
    tgt_p = _round_up(tgt, 128)

    w1t = jnp.zeros((in_ch, out_p), jnp.bfloat16)
    w1t = w1t.at[:, :out_ch].set(w1.T.astype(jnp.bfloat16))
    w2t = jnp.zeros((out_p, tgt_p), jnp.bfloat16)
    w2t = w2t.at[:out_ch, :tgt].set(w2.T.astype(jnp.bfloat16))
    b1r = jnp.zeros((1, out_p), jnp.float32).at[:, :out_ch].set(b1.astype(jnp.float32))
    b2r = jnp.zeros((1, tgt_p), jnp.float32).at[:, :tgt].set(b2.astype(jnp.float32))
    return w1t, b1r, w2t, b2r, out_ch, tgt


def _pick_tile_and_vmem(B, in_ch, out_p, tgt_p, budget_bytes=24 * 1024 * 1024):
    """Largest batch tile (multiple of 8, <=512) fitting a v7x-safe VMEM budget."""
    weight_bytes = (in_ch * out_p + out_p * tgt_p) * 2 + (out_p + tgt_p) * 4
    # Double-buffered x tile (bf16) + out/pout tiles (f32).
    per_row = 2 * (in_ch * 2 + out_p * 4 + tgt_p * 4)
    avail = max(budget_bytes - weight_bytes, per_row * 8)
    tb = max(8, min(512, (avail // per_row) // 8 * 8))
    tb = min(tb, _round_up(B, 8))
    need = weight_bytes + tb * per_row
    vmem_limit = min(max(2 * need, 8 * 1024 * 1024), 28 * 1024 * 1024)
    return tb, vmem_limit


@functools.partial(jax.jit, static_argnames=("out_channels", "target_size"))
def analog_dense_dcll_forward(x, w1t, b1r, w2t, b2r, out_channels, target_size):
    """x: [B, in_channels] (f32). Returns (out [B,out_channels], pout [B,target_size])."""
    B, in_ch = x.shape
    out_p = w1t.shape[1]
    tgt_p = w2t.shape[1]

    tb, vmem_limit = _pick_tile_and_vmem(B, in_ch, out_p, tgt_p)
    b_pad = _round_up(B, tb)

    xb = x.astype(jnp.bfloat16)
    if b_pad != B:
        xb = jnp.pad(xb, ((0, b_pad - B), (0, 0)))

    grid = (b_pad // tb,)
    flops = 2 * b_pad * (in_ch * out_p + out_p * tgt_p)
    bytes_accessed = (xb.size * 2 + w1t.size * 2 + w2t.size * 2
                      + b1r.size * 4 + b2r.size * 4
                      + b_pad * out_p * 4 + b_pad * tgt_p * 4)

    # TODO(synk): for very large in_channels add a K-reduction grid axis with a
    # f32 VMEM accumulator (pl.when init / epilogue) instead of a single K.
    out, pout = pl.pallas_call(
        dcll_kernel,
        grid=grid,
        in_specs=[
            pl.BlockSpec((tb, in_ch), lambda i: (i, 0)),       # streamed per tile
            pl.BlockSpec(w1t.shape,   lambda i: (0, 0)),       # VMEM-resident
            pl.BlockSpec(b1r.shape,   lambda i: (0, 0)),
            pl.BlockSpec(w2t.shape,   lambda i: (0, 0)),
            pl.BlockSpec(b2r.shape,   lambda i: (0, 0)),
        ],
        out_specs=[
            pl.BlockSpec((tb, out_p), lambda i: (i, 0)),
            pl.BlockSpec((tb, tgt_p), lambda i: (i, 0)),
        ],
        out_shape=[
            jax.ShapeDtypeStruct((b_pad, out_p), jnp.float32),
            jax.ShapeDtypeStruct((b_pad, tgt_p), jnp.float32),
        ],
        compiler_params=pltpu.CompilerParams(
            dimension_semantics=("parallel",),
            vmem_limit_bytes=vmem_limit,
        ),
        cost_estimate=pl.CostEstimate(
            flops=flops,
            transcendentals=b_pad * out_p,
            bytes_accessed=bytes_accessed,
        ),
    )(xb, w1t, b1r, w2t, b2r)

    out = out[:B, :out_channels]
    pout = pout[:B, :target_size]
    # PyTorch out.detach() -> stop_gradient (forward values identical).
    return jax.lax.stop_gradient(out), pout


if __name__ == "__main__":
    # Small deterministic config consistent with the module's __init__.
    batch = 8
    in_channels = 32
    out_channels = 64
    target_size = 16

    key = jax.random.PRNGKey(0)
    kx, kw1, kb1, kw2, kb2 = jax.random.split(key, 5)

    # PyTorch nn.Linear default init: U(-1/sqrt(fan_in), 1/sqrt(fan_in)).
    bound1 = 1.0 / (in_channels ** 0.5)
    bound2 = 1.0 / (out_channels ** 0.5)
    x = jax.random.normal(kx, (batch, in_channels), dtype=jnp.float32)
    w1 = jax.random.uniform(kw1, (out_channels, in_channels), jnp.float32, -bound1, bound1)
    b1 = jax.random.uniform(kb1, (out_channels,), jnp.float32, -bound1, bound1)
    w2 = jax.random.uniform(kw2, (target_size, out_channels), jnp.float32, -bound2, bound2)
    b2 = jax.random.uniform(kb2, (target_size,), jnp.float32, -bound2, bound2)

    # One-time parameter prep (transpose + pad + bf16 cast), like model state.
    w1t, b1r, w2t, b2r, oc, ts = prepare_params(w1, b1, w2, b2)

    out, pout = analog_dense_dcll_forward(x, w1t, b1r, w2t, b2r, oc, ts)
    jax.block_until_ready((out, pout))

    # Reference with the same bf16 operand rounding (f32 accumulation).
    xb = x.astype(jnp.bfloat16).astype(jnp.float32)
    w1b = w1.astype(jnp.bfloat16).astype(jnp.float32)
    w2b = w2.astype(jnp.bfloat16).astype(jnp.float32)
    ref_out = jax.nn.sigmoid(xb @ w1b.T + b1)
    ref_pout = ref_out.astype(jnp.bfloat16).astype(jnp.float32) @ w2b.T + b2

    assert out.shape == (batch, out_channels)
    assert pout.shape == (batch, target_size)
    assert jnp.allclose(out, ref_out, atol=1e-2, rtol=1e-2)
    assert jnp.allclose(pout, ref_pout, atol=1e-2, rtol=1e-2)

    print("KERNEL_OK")
</pallas_src>

<mosaic_0001>
module attributes {stable_mosaic.version = 11 : i64} {
  func.func @dcll_kernel(%arg0: i32, %arg1: memref<8x32xbf16, #tpu.memory_space<vmem>>, %arg2: memref<32x128xbf16, #tpu.memory_space<vmem>>, %arg3: memref<1x128xf32, #tpu.memory_space<vmem>>, %arg4: memref<128x128xbf16, #tpu.memory_space<vmem>>, %arg5: memref<1x128xf32, #tpu.memory_space<vmem>>, %arg6: memref<8x128xf32, #tpu.memory_space<vmem>>, %arg7: memref<8x128xf32, #tpu.memory_space<vmem>>) attributes {dimension_semantics = [#tpu.dimension_semantics<parallel>], iteration_bounds = array<i64: 1>, scalar_prefetch = 0 : i64, scratch_operands = 0 : i64, tpu.core_type = #tpu.core_type<tc>, window_params = [{transform_indices = @transform_0, window_bounds = array<i64: 8, 32>}, {pipeline_mode = #tpu.pipeline_mode<synchronous>, transform_indices = @transform_1, window_bounds = array<i64: 32, 128>}, {pipeline_mode = #tpu.pipeline_mode<synchronous>, transform_indices = @transform_2, window_bounds = array<i64: 1, 128>}, {pipeline_mode = #tpu.pipeline_mode<synchronous>, transform_indices = @transform_3, window_bounds = array<i64: 128, 128>}, {pipeline_mode = #tpu.pipeline_mode<synchronous>, transform_indices = @transform_4, window_bounds = array<i64: 1, 128>}, {transform_indices = @transform_5, window_bounds = array<i64: 8, 128>}, {transform_indices = @transform_6, window_bounds = array<i64: 8, 128>}]} {
    %c0 = arith.constant 0 : index
    %c0_0 = arith.constant 0 : index
    %0 = vector.load %arg1[%c0, %c0_0] : memref<8x32xbf16, #tpu.memory_space<vmem>>, vector<8x32xbf16>
    %c0_1 = arith.constant 0 : index
    %c0_2 = arith.constant 0 : index
    %1 = vector.load %arg2[%c0_1, %c0_2] : memref<32x128xbf16, #tpu.memory_space<vmem>>, vector<32x128xbf16>
    %cst = arith.constant dense<0.000000e+00> : vector<8x128xf32>
    %2 = tpu.matmul %0, %1, %cst {dimension_numbers = #tpu.dot_dimension_numbers<[1], [0], [0], [1], [0, 0, 1, 1], [], []>} : vector<8x32xbf16>, vector<32x128xbf16>, vector<8x128xf32> -> vector<8x128xf32>
    %c0_3 = arith.constant 0 : index
    %c0_4 = arith.constant 0 : index
    %3 = vector.load %arg3[%c0_3, %c0_4] : memref<1x128xf32, #tpu.memory_space<vmem>>, vector<1x128xf32>
    %4 = vector.broadcast %3 : vector<1x128xf32> to vector<8x128xf32>
    %5 = arith.addf %2, %4 : vector<8x128xf32>
    %6 = arith.negf %5 : vector<8x128xf32>
    %7 = math.exp %6 : vector<8x128xf32>
    %cst_5 = arith.constant 1.000000e+00 : f32
    %8 = vector.broadcast %cst_5 : f32 to vector<8x128xf32>
    %9 = arith.addf %8, %7 : vector<8x128xf32>
    %10 = arith.divf %8, %9 : vector<8x128xf32>
    %c0_6 = arith.constant 0 : index
    %c0_7 = arith.constant 0 : index
    %11 = vector.load %arg6[%c0_6, %c0_7] : memref<8x128xf32, #tpu.memory_space<vmem>>, vector<8x128xf32>
    tpu.vector_store %arg6[%c0_6, %c0_7], %10 {strides = array<i32>} : memref<8x128xf32, #tpu.memory_space<vmem>>, vector<8x128xf32>,
    %12 = arith.truncf %10 : vector<8x128xf32> to vector<8x128xbf16>
    %c0_8 = arith.constant 0 : index
    %c0_9 = arith.constant 0 : index
    %13 = vector.load %arg4[%c0_8, %c0_9] : memref<128x128xbf16, #tpu.memory_space<vmem>>, vector<128x128xbf16>
    %cst_10 = arith.constant dense<0.000000e+00> : vector<8x128xf32>
    %14 = tpu.matmul %12, %13, %cst_10 {dimension_numbers = #tpu.dot_dimension_numbers<[1], [0], [0], [1], [0, 0, 1, 1], [], []>} : vector<8x128xbf16>, vector<128x128xbf16>, vector<8x128xf32> -> vector<8x128xf32>
    %c0_11 = arith.constant 0 : index
    %c0_12 = arith.constant 0 : index
    %15 = vector.load %arg5[%c0_11, %c0_12] : memref<1x128xf32, #tpu.memory_space<vmem>>, vector<1x128xf32>
    %16 = vector.broadcast %15 : vector<1x128xf32> to vector<8x128xf32>
    %17 = arith.addf %14, %16 : vector<8x128xf32>
    %c0_13 = arith.constant 0 : index
    %c0_14 = arith.constant 0 : index
    %18 = vector.load %arg7[%c0_13, %c0_14] : memref<8x128xf32, #tpu.memory_space<vmem>>, vector<8x128xf32>
    tpu.vector_store %arg7[%c0_13, %c0_14], %17 {strides = array<i32>} : memref<8x128xf32, #tpu.memory_space<vmem>>, vector<8x128xf32>,
    return
  }
  func.func @transform_0(%arg0: i32) -> (i32, i32) {
    %c0_i32 = arith.constant 0 : i32
    %c0_i32_0 = arith.constant 0 : i32
    return %arg0, %c0_i32 : i32, i32
  }
  func.func @transform_1(%arg0: i32) -> (i32, i32) {
    %c0_i32 = arith.constant 0 : i32
    %c0_i32_0 = arith.constant 0 : i32
    %c0_i32_1 = arith.constant 0 : i32
    return %c0_i32, %c0_i32_0 : i32, i32
  }
  func.func @transform_2(%arg0: i32) -> (i32, i32) {
    %c0_i32 = arith.constant 0 : i32
    %c0_i32_0 = arith.constant 0 : i32
    %c0_i32_1 = arith.constant 0 : i32
    return %c0_i32, %c0_i32_0 : i32, i32
  }
  func.func @transform_3(%arg0: i32) -> (i32, i32) {
    %c0_i32 = arith.constant 0 : i32
    %c0_i32_0 = arith.constant 0 : i32
    %c0_i32_1 = arith.constant 0 : i32
    return %c0_i32, %c0_i32_0 : i32, i32
  }
  func.func @transform_4(%arg0: i32) -> (i32, i32) {
    %c0_i32 = arith.constant 0 : i32
    %c0_i32_0 = arith.constant 0 : i32
    %c0_i32_1 = arith.constant 0 : i32
    return %c0_i32, %c0_i32_0 : i32, i32
  }
  func.func @transform_5(%arg0: i32) -> (i32, i32) {
    %c0_i32 = arith.constant 0 : i32
    %c0_i32_0 = arith.constant 0 : i32
    return %arg0, %c0_i32 : i32, i32
  }
  func.func @transform_6(%arg0: i32) -> (i32, i32) {
    %c0_i32 = arith.constant 0 : i32
    %c0_i32_0 = arith.constant 0 : i32
    return %arg0, %c0_i32 : i32, i32
  }
}

</mosaic_0001>

<llo_original>
// kernel: analog_dense_dcll_forward.1
$region0: #{analog_dense_dcll_forward.1}
  #allocation0 [shape = 'u32[]', space=smem, size = 0x4, offset = 0x4, fixed_abs, tag = 'smem constant byte address 0x4 - core index']
  #allocation1 [shape = 'u32[144,128]{1,0:T(1,128)}', space=vmem, size = 0x12000, scoped, tag = 'internal scratch']
  %s0 = inlined_call_operand.vmem [shape: bf16[8,32], index: 0, kind: input, shape index: {}]
  %s1 = inlined_call_operand.hbm [shape: bf16[32,128], index: 1, kind: input, shape index: {}]
  %s2 = inlined_call_operand.vmem [shape: f32[1,128], index: 2, kind: input, shape index: {}]
  %s3 = inlined_call_operand.hbm [shape: bf16[128,128], index: 3, kind: input, shape index: {}]
  %s4 = inlined_call_operand.vmem [shape: f32[1,128], index: 4, kind: input, shape index: {}]
  %s5 = inlined_call_operand.hbm [shape: f32[8,128], index: 5, kind: output, shape index: {0}]
  %s6 = inlined_call_operand.hbm [shape: f32[8,128], index: 6, kind: output, shape index: {1}]
  %7 = xla_tuple %s5, %s6
  %s8 = sld [smem:[#allocation0]]
  $region46: #{analog_dense_dcll_forward.1} parent=0
    _
  %s10 = ssub.s32 1, %s8
  %s11 = scalar_select 0, %s10, %s8
  $region1: #{analog_dense_dcll_forward.1} parent=0
    #allocation2 [shape = 'u8[8192]{0}', space=vmem, size = 0x2000, scoped, tag = 'input window, operand 1, single buffered']
    #allocation3 [shape = 's32[1]{0}', space=sflag, size = 0x4, scoped, tag = 'scoped memory for analog_dense_dcll_forward.1']
    #allocation4 [shape = 's32[1]{0}', space=sflag, size = 0x4, scoped, tag = 'scoped memory for analog_dense_dcll_forward.1']
    #allocation5 [shape = 'u8[32768]{0}', space=vmem, size = 0x8000, scoped, tag = 'input window, operand 3, single buffered']
    #allocation6 [shape = 's32[1]{0}', space=sflag, size = 0x4, scoped, tag = 'scoped memory for analog_dense_dcll_forward.1']
    #allocation7 [shape = 'u8[4096]{0}', space=vmem, size = 0x1000, scoped, tag = 'output window, operand 0, single buffered']
    #allocation8 [shape = 'u8[4096]{0}', space=vmem, size = 0x1000, scoped, tag = 'output window, operand 1, single buffered']
    #allocation9 [shape = 's32[1]{0}', space=sflag, size = 0x4, scoped, tag = 'scoped memory for analog_dense_dcll_forward.1']
    %12 = vsyncpa [#allocation3], 0
    %13 = vsyncpa [#allocation6], 0
    %14 = vsyncpa [#allocation4], 0
    %15 = vsyncpa [#allocation9], 0
    // Predicated region
    $region2: #{analog_dense_dcll_forward.1} parent=1 // pred_check
      _
    $region3: #{analog_dense_dcll_forward.1} parent=1 // pred_check_branch
      %17 = sbr.rel (0) target = $region5
    $region4: #{analog_dense_dcll_forward.1} parent=1 // pred_region
      _
    $region5: #{analog_dense_dcll_forward.1} parent=1 // pred_fallthru
      _
    // Predicated region
    $region6: #{analog_dense_dcll_forward.1} parent=1 // pred_check
      _
    $region7: #{analog_dense_dcll_forward.1} parent=1 // pred_check_branch
      %19 = sbr.rel (0) target = $region9
    $region8: #{analog_dense_dcll_forward.1} parent=1 // pred_region
      %s21 = ssub.s32 256, 256
      %22 = vsyncadd [#allocation3], %s21
      %s23 = sshll.u32 [#allocation2], 4
      %s24 = int_to_ptr.vmem [resolvable:$true] %s23
      %29 = dma.hbm_to_vmem [thread:$0]  %s1, 256, %s24, [#allocation3], 64, 64, 4
    $region9: #{analog_dense_dcll_forward.1} parent=1 // pred_fallthru
      _
    // Predicated region
    $region10: #{analog_dense_dcll_forward.1} parent=1 // pred_check
      _
    $region11: #{analog_dense_dcll_forward.1} parent=1 // pred_check_branch
      %31 = sbr.rel (0) target = $region13
    $region12: #{analog_dense_dcll_forward.1} parent=1 // pred_region
      _
    $region13: #{analog_dense_dcll_forward.1} parent=1 // pred_fallthru
      _
    // Predicated region
    $region14: #{analog_dense_dcll_forward.1} parent=1 // pred_check
      _
    $region15: #{analog_dense_dcll_forward.1} parent=1 // pred_check_branch
      %33 = sbr.rel (0) target = $region17
    $region16: #{analog_dense_dcll_forward.1} parent=1 // pred_region
      %s35 = ssub.s32 1024, 1024
      %36 = vsyncadd [#allocation6], %s35
      %s37 = sshll.u32 [#allocation5], 4
      %s38 = int_to_ptr.vmem [resolvable:$true] %s37
      %43 = dma.hbm_to_vmem [thread:$0]  %s3, 1024, %s38, [#allocation6], 64, 64, 4
    $region17: #{analog_dense_dcll_forward.1} parent=1 // pred_fallthru
      _
    // Predicated region
    $region18: #{analog_dense_dcll_forward.1} parent=1 // pred_check
      _
    $region19: #{analog_dense_dcll_forward.1} parent=1 // pred_check_branch
      %45 = sbr.rel (0) target = $region21
    $region20: #{analog_dense_dcll_forward.1} parent=1 // pred_region
      _
    $region21: #{analog_dense_dcll_forward.1} parent=1 // pred_fallthru
      _
    // Predicated region
    $region22: #{analog_dense_dcll_forward.1} parent=1 // pred_check
      _
    $region23: #{analog_dense_dcll_forward.1} parent=1 // pred_check_branch
      %47 = sbr.rel (0) target = $region25
    $region24: #{analog_dense_dcll_forward.1} parent=1 // pred_region
      %48 = dma.done [#allocation3], 256
    $region25: #{analog_dense_dcll_forward.1} parent=1 // pred_fallthru
      _
    // Predicated region
    $region26: #{analog_dense_dcll_forward.1} parent=1 // pred_check
      _
    $region27: #{analog_dense_dcll_forward.1} parent=1 // pred_check_branch
      %50 = sbr.rel (0) target = $region29
    $region28: #{analog_dense_dcll_forward.1} parent=1 // pred_region
      %51 = dma.done [#allocation6], 1024
    $region29: #{analog_dense_dcll_forward.1} parent=1 // pred_fallthru
      _
    %v53 = vld [vmem:[%s0] sm:$0xf]
    %v54 = vld [vmem:[#allocation2] sm:$0xf]
    %v55 = vld [vmem:[#allocation2 + $0x4] sm:$0xf]
    %v56 = vld [vmem:[#allocation2 + $0x8] sm:$0xf]
    %v57 = vld [vmem:[#allocation2 + $0xc] sm:$0xf]
    %v58 = vld [vmem:[%s2] sm:$0x1]
    %v60 = vlaneseq
    %v61 = vshrl.u32 %v60, 7
    %v62 = vsub.s32 0, %v61
    %v63 = vrot.slane %v58, %v62
    %v69 = vunpack.c.l.b16 %v54
    %v70 = vunpack.c.l.b16 %v55
    %v71 = vunpack.c.l.b16 %v56
    %v72 = vunpack.c.l.b16 %v57
    %v73 = vpack.c.b16 %v70, %v69
    %v74 = vpack.c.b16 %v72, %v71
    %vm77 = vcmask 261120
    %v79 = vsel %vm77, %v53, 0
    %81 = vmatprep.subr.bf16.mxu0 0
    %82 = vmatpush1.bf16.msra.mxu0 %v73
    %83 = vmatprep.subr.bf16.mxu0 0
    %84 = vmatpush1.bf16.msra.mxu0 %v74
    %85 = vmatprep.subr.bf16.mxu0 0
    %86 = vmatpush1.bf16.msra.mxu0 0
    %87 = vmatprep.subr.bf16.mxu0 0
    %88 = vmatpush1.bf16.msra.mxu0 0
    %89 = vmatprep.subr.bf16.mxu0 0
    %90 = vmatpush1.bf16.msra.mxu0 0
    %91 = vmatprep.subr.bf16.mxu0 0
    %92 = vmatpush1.bf16.msra.mxu0 0
    %93 = vmatprep.subr.bf16.mxu0 0
    %94 = vmatpush1.bf16.msra.mxu0 0
    %95 = vmatprep.subr.bf16.mxu0 0
    %96 = vmatpush1.bf16.msra.mxu0 0
    %97 = vmatprep.subr.bf16.mxu0 0
    %98 = vmatpush1.bf16.msra.mxu0 0
    %99 = vmatprep.subr.bf16.mxu0 0
    %100 = vmatpush1.bf16.msra.mxu0 0
    %101 = vmatprep.subr.bf16.mxu0 0
    %102 = vmatpush1.bf16.msra.mxu0 0
    %103 = vmatprep.subr.bf16.mxu0 0
    %104 = vmatpush1.bf16.msra.mxu0 0
    %105 = vmatprep.subr.bf16.mxu0 0
    %106 = vmatpush1.bf16.msra.mxu0 0
    %107 = vmatprep.subr.bf16.mxu0 0
    %108 = vmatpush1.bf16.msra.mxu0 0
    %109 = vmatprep.subr.bf16.mxu0 0
    %110 = vmatpush1.bf16.msra.mxu0 0
    %111 = vmatprep.subr.bf16.mxu0 0
    %112 = vmatpush1.bf16.msra.mxu0 0
    %113 = vmatprep.mubr.bf16.mxu0 0
    %114 = vmatmul.mubr.bf16.gmra.mrb[0].mxu0 %v79
    %v115 = vpop.f32.mrb[0].mxu0
    %v116 = vadd.f32 %v63, %v115
    %v117 = vpop.f32.mrb[0].mxu0
    %v118 = vpop.f32.mrb[0].mxu0
    %v119 = vpop.f32.mrb[0].mxu0
    %120 = vdwg.mxu0
    %v121 = vxor.u32 %v116, 2147483648
    %v122 = vmul.f32 %v121, 1.442695
    %v123 = vpow.pop %v122
    %v124 = vadd.f32 %v123, 1.0
    %v125 = vrcp.pop %v124
    %v126 = vmul.f32 1.0, %v125
    %127 = vst [vmem:[#allocation7] sm:$0xff] %v126
    %v128 = vpack.c.bf16 %v126, %v126
    %v129 = vld [vmem:[#allocation5] sm:$0xf]
    %v130 = vld [vmem:[#allocation5 + $0x4] sm:$0xf]
    %v131 = vld [vmem:[#allocation5 + $0x8] sm:$0xf]
    %v132 = vld [vmem:[#allocation5 + $0xc] sm:$0xf]
    %v133 = vld [vmem:[#allocation5 + $0x10] sm:$0xf]
    %v134 = vld [vmem:[#allocation5 + $0x14] sm:$0xf]
    %v135 = vld [vmem:[#allocation5 + $0x18] sm:$0xf]
    %v136 = vld [vmem:[#allocation5 + $0x1c] sm:$0xf]
    %v137 = vld [vmem:[#allocation5 + $0x20] sm:$0xf]
    %v138 = vld [vmem:[#allocation5 + $0x24] sm:$0xf]
    %v139 = vld [vmem:[#allocation5 + $0x28] sm:$0xf]
    %v140 = vld [vmem:[#allocation5 + $0x2c] sm:$0xf]
    %v141 = vld [vmem:[#allocation5 + $0x30] sm:$0xf]
    %v142 = vld [vmem:[#allocation5 + $0x34] sm:$0xf]
    %v143 = vld [vmem:[#allocation5 + $0x38] sm:$0xf]
    %v144 = vld [vmem:[#allocation5 + $0x3c] sm:$0xf]
    %v145 = vld [vmem:[%s4] sm:$0x1]
    %v147 = vlaneseq
    %v148 = vshrl.u32 %v147, 7
    %v149 = vsub.s32 0, %v148
    %v150 = vrot.slane %v145, %v149
    %v168 = vunpack.c.l.b16 %v129
    %v169 = vunpack.c.l.b16 %v130
    %v170 = vunpack.c.l.b16 %v131
    %v171 = vunpack.c.l.b16 %v132
    %v172 = vunpack.c.l.b16 %v133
    %v173 = vunpack.c.l.b16 %v134
    %v174 = vunpack.c.l.b16 %v135
    %v175 = vunpack.c.l.b16 %v136
    %v176 = vunpack.c.l.b16 %v137
    %v177 = vunpack.c.l.b16 %v138
    %v178 = vunpack.c.l.b16 %v139
    %v179 = vunpack.c.l.b16 %v140
    %v180 = vunpack.c.l.b16 %v141
    %v181 = vunpack.c.l.b16 %v142
    %v182 = vunpack.c.l.b16 %v143
    %v183 = vunpack.c.l.b16 %v144
    %v184 = vpack.c.b16 %v169, %v168
    %v185 = vpack.c.b16 %v171, %v170
    %v186 = vpack.c.b16 %v173, %v172
    %v187 = vpack.c.b16 %v175, %v174
    %v188 = vpack.c.b16 %v177, %v176
    %v189 = vpack.c.b16 %v179, %v178
    %v190 = vpack.c.b16 %v181, %v180
    %v191 = vpack.c.b16 %v183, %v182
    %200 = vmatprep.subr.bf16.mxu0 0
    %201 = vmatpush1.bf16.msra.mxu0 %v184
    %202 = vmatprep.subr.bf16.mxu0 0
    %203 = vmatpush1.bf16.msra.mxu0 %v185
    %204 = vmatprep.subr.bf16.mxu0 0
    %205 = vmatpush1.bf16.msra.mxu0 %v186
    %206 = vmatprep.subr.bf16.mxu0 0
    %207 = vmatpush1.bf16.msra.mxu0 %v187
    %208 = vmatprep.subr.bf16.mxu0 0
    %209 = vmatpush1.bf16.msra.mxu0 %v188
    %210 = vmatprep.subr.bf16.mxu0 0
    %211 = vmatpush1.bf16.msra.mxu0 %v189
    %212 = vmatprep.subr.bf16.mxu0 0
    %213 = vmatpush1.bf16.msra.mxu0 %v190
    %214 = vmatprep.subr.bf16.mxu0 0
    %215 = vmatpush1.bf16.msra.mxu0 %v191
    %216 = vmatprep.subr.bf16.mxu0 0
    %217 = vmatpush1.bf16.msra.mxu0 0
    %218 = vmatprep.subr.bf16.mxu0 0
    %219 = vmatpush1.bf16.msra.mxu0 0
    %220 = vmatprep.subr.bf16.mxu0 0
    %221 = vmatpush1.bf16.msra.mxu0 0
    %222 = vmatprep.subr.bf16.mxu0 0
    %223 = vmatpush1.bf16.msra.mxu0 0
    %224 = vmatprep.subr.bf16.mxu0 0
    %225 = vmatpush1.bf16.msra.mxu0 0
    %226 = vmatprep.subr.bf16.mxu0 0
    %227 = vmatpush1.bf16.msra.mxu0 0
    %228 = vmatprep.subr.bf16.mxu0 0
    %229 = vmatpush1.bf16.msra.mxu0 0
    %230 = vmatprep.subr.bf16.mxu0 0
    %231 = vmatpush1.bf16.msra.mxu0 0
    %232 = vmatprep.mubr.bf16.mxu0 0
    %233 = vmatmul.mubr.bf16.gmra.mrb[0].mxu0 %v128
    %v234 = vpop.f32.mrb[0].mxu0
    %v235 = vadd.f32 %v150, %v234
    %v236 = vpop.f32.mrb[0].mxu0
    %v237 = vpop.f32.mrb[0].mxu0
    %v238 = vpop.f32.mrb[0].mxu0
    %239 = vdwg.mxu0
    %240 = vst [vmem:[#allocation8] sm:$0xff] %v235
    // Predicated region
    $region30: #{analog_dense_dcll_forward.1} parent=1 // pred_check
      _
    $region31: #{analog_dense_dcll_forward.1} parent=1 // pred_check_branch
      %242 = sbr.rel (0) target = $region33
    $region32: #{analog_dense_dcll_forward.1} parent=1 // pred_region
      %s244 = ssub.s32 128, 128
      %245 = vsyncadd [#allocation4], %s244
      %s247 = sshll.u32 [#allocation7], 4
      %s248 = int_to_ptr.vmem [resolvable:$true] %s247
      %250 = dma.vmem_to_hbm [thread:$0]  %s248, 128, %s5, [#allocation4]
    $region33: #{analog_dense_dcll_forward.1} parent=1 // pred_fallthru
      _
    // Predicated region
    $region34: #{analog_dense_dcll_forward.1} parent=1 // pred_check
      _
    $region35: #{analog_dense_dcll_forward.1} parent=1 // pred_check_branch
      %252 = sbr.rel (0) target = $region37
    $region36: #{analog_dense_dcll_forward.1} parent=1 // pred_region
      %s254 = ssub.s32 128, 128
      %255 = vsyncadd [#allocation9], %s254
      %s257 = sshll.u32 [#allocation8], 4
      %s258 = int_to_ptr.vmem [resolvable:$true] %s257
      %260 = dma.vmem_to_hbm [thread:$0]  %s258, 128, %s6, [#allocation9]
    $region37: #{analog_dense_dcll_forward.1} parent=1 // pred_fallthru
      _
    // Predicated region
    $region38: #{analog_dense_dcll_forward.1} parent=1 // pred_check
      _
    $region39: #{analog_dense_dcll_forward.1} parent=1 // pred_check_branch
      %262 = sbr.rel (0) target = $region41
    $region40: #{analog_dense_dcll_forward.1} parent=1 // pred_region
      %263 = dma.done [#allocation4], 128
    $region41: #{analog_dense_dcll_forward.1} parent=1 // pred_fallthru
      _
    // Predicated region
    $region42: #{analog_dense_dcll_forward.1} parent=1 // pred_check
      _
    $region43: #{analog_dense_dcll_forward.1} parent=1 // pred_check_branch
      %265 = sbr.rel (0) target = $region45
    $region44: #{analog_dense_dcll_forward.1} parent=1 // pred_region
      %266 = dma.done [#allocation9], 128
    $region45: #{analog_dense_dcll_forward.1} parent=1 // pred_fallthru
      _
    %267 = vsyncpa [#allocation3], 1
    %268 = vsyncpa [#allocation6], 1
    %269 = vsyncpa [#allocation4], 1
    %270 = vsyncpa [#allocation9], 1

</llo_original>
